<compile_context>
chip_gen: v7x
topology: tpu7x:2x2x1
jax: 0.10.0
libtpu: 0.0.40
codegen_flags: <defaults>
</compile_context>

<pallas_src>
import functools

import jax
import jax.numpy as jnp
from jax.experimental import pallas as pl
from jax.experimental.pallas import tpu as pltpu


def milstm_kernel(x_ref, h_ref, c_ref,
                  wx_ref, wh_ref, bx_ref, bh_ref,
                  alpha_ref, b1_ref, b2_ref,
                  wc_ref, bc_ref,
                  out_ref, hout_ref, cout_ref, *, H):
    # Two wide MXU matmuls (bf16 operands, f32 accumulation) replace 8 small dots.
    gx = jnp.dot(x_ref[...], wx_ref[...],
                 preferred_element_type=jnp.float32) + bx_ref[...]
    gh = jnp.dot(h_ref[...], wh_ref[...],
                 preferred_element_type=jnp.float32) + bh_ref[...]

    # Factored MI combination (one fewer VPU multiply per element), all f32.
    pre = gx * (alpha_ref[...] * gh + b1_ref[...]) + b2_ref[...] * gh

    # Lane-aligned gate slices, order (f, i, o, z).
    f_g = jax.nn.sigmoid(pre[:, 0 * H:1 * H])
    i_g = jax.nn.sigmoid(pre[:, 1 * H:2 * H])
    o_g = jax.nn.sigmoid(pre[:, 2 * H:3 * H])
    z_t = jnp.tanh(pre[:, 3 * H:4 * H])

    cx = f_g * c_ref[...] + i_g * z_t
    hx = o_g * jnp.tanh(cx)

    hout_ref[...] = hx
    cout_ref[...] = cx
    out_ref[...] = (jnp.dot(hx.astype(wc_ref.dtype), wc_ref[...],
                            preferred_element_type=jnp.float32) + bc_ref[...])


def milstm_forward(x, h0, c0, params, n_class):
    B, D_in = x.shape
    H = h0.shape[1]
    Cpad = params["wc_p"].shape[1]

    # bf16 for MXU operands only; state / elementwise math stays f32.
    x_bf = x.astype(jnp.bfloat16)
    h_bf = h0.astype(jnp.bfloat16)

    inputs = (
        x_bf, h_bf, c0,
        params["wx_flat"], params["wh_flat"],
        params["bx_flat"], params["bh_flat"],
        params["alpha_flat"], params["b1_flat"], params["b2_flat"],
        params["wc_p"], params["bc_p"],
    )

    out_shapes = (
        jax.ShapeDtypeStruct((B, Cpad), jnp.float32),  # logits (padded)
        jax.ShapeDtypeStruct((B, H), jnp.float32),     # new_h
        jax.ShapeDtypeStruct((B, H), jnp.float32),     # new_c
    )

    # Cost estimate + a VMEM limit sized to the actual resident footprint.
    flops = 2 * B * (D_in * 4 * H + H * 4 * H + H * Cpad)
    transcendentals = 6 * B * H  # 3 sigmoid + 2 tanh (+exp internals headroom)
    in_bytes = sum(a.size * a.dtype.itemsize for a in inputs)
    out_bytes = sum(B * s * 4 for s in (Cpad, H, H))
    bytes_accessed = in_bytes + out_bytes
    vmem_limit = min(32 * 1024 * 1024, 4 * bytes_accessed + 4 * 1024 * 1024)

    vmem = pl.BlockSpec(memory_space=pltpu.MemorySpace.VMEM)
    logits_pad, new_h, new_c = pl.pallas_call(
        functools.partial(milstm_kernel, H=H),
        out_shape=out_shapes,
        in_specs=[vmem] * len(inputs),
        out_specs=(vmem, vmem, vmem),
        compiler_params=pltpu.CompilerParams(vmem_limit_bytes=vmem_limit),
        cost_estimate=pl.CostEstimate(flops=flops,
                                      transcendentals=transcendentals,
                                      bytes_accessed=bytes_accessed),
    )(*inputs)

    return logits_pad[:, :n_class], new_h, new_c


def init_params(key, input_size, hidden_size, n_class, c_pad):
    ks = jax.random.split(key, 6)
    s_in = 1.0 / jnp.sqrt(input_size)
    s_h = 1.0 / jnp.sqrt(hidden_size)

    # Per-gate f32 parameters (gate order f, i, o, z) — kept for the reference.
    wx = jax.random.uniform(ks[0], (4, input_size, hidden_size), jnp.float32, -s_in, s_in)
    bx = jax.random.uniform(ks[1], (4, hidden_size), jnp.float32, -s_in, s_in)
    wh = jax.random.uniform(ks[2], (4, hidden_size, hidden_size), jnp.float32, -s_h, s_h)
    bh = jax.random.uniform(ks[3], (4, hidden_size), jnp.float32, -s_h, s_h)

    # alpha / beta params are initialized to ones in the PyTorch module.
    alpha = jnp.ones((4, hidden_size), jnp.float32)
    beta1 = jnp.ones((4, hidden_size), jnp.float32)
    beta2 = jnp.ones((4, hidden_size), jnp.float32)

    wc = jax.random.uniform(ks[4], (hidden_size, n_class), jnp.float32, -s_h, s_h)
    bc = jax.random.uniform(ks[5], (n_class,), jnp.float32, -s_h, s_h)

    # ---- Packed / fused kernel-side layout (layout plumbing only) ----
    wx_flat = jnp.concatenate([wx[g] for g in range(4)], axis=1).astype(jnp.bfloat16)  # (D_in, 4H)
    wh_flat = jnp.concatenate([wh[g] for g in range(4)], axis=1).astype(jnp.bfloat16)  # (H, 4H)
    bx_flat = bx.reshape(1, 4 * hidden_size)
    bh_flat = bh.reshape(1, 4 * hidden_size)
    alpha_flat = alpha.reshape(1, 4 * hidden_size)
    b1_flat = beta1.reshape(1, 4 * hidden_size)
    b2_flat = beta2.reshape(1, 4 * hidden_size)

    wc_p = (jnp.zeros((hidden_size, c_pad), jnp.float32)
            .at[:, :n_class].set(wc)).astype(jnp.bfloat16)
    bc_p = jnp.zeros((1, c_pad), jnp.float32).at[0, :n_class].set(bc)

    return dict(wx=wx, bx=bx, wh=wh, bh=bh,
                alpha=alpha, beta1=beta1, beta2=beta2,
                wc=wc, bc=bc,
                wx_flat=wx_flat, wh_flat=wh_flat,
                bx_flat=bx_flat, bh_flat=bh_flat,
                alpha_flat=alpha_flat, b1_flat=b1_flat, b2_flat=b2_flat,
                wc_p=wc_p, bc_p=bc_p)


def milstm_reference(x, h0, c0, p, n_class):
    """Reference matching the kernel's numerics: bf16 MXU operands, f32 elsewhere."""
    xb = x.astype(jnp.bfloat16)
    hb = h0.astype(jnp.bfloat16)

    def gate(g, act):
        gx = jnp.dot(xb, p["wx"][g].astype(jnp.bfloat16),
                     preferred_element_type=jnp.float32) + p["bx"][g][None, :]
        gh = jnp.dot(hb, p["wh"][g].astype(jnp.bfloat16),
                     preferred_element_type=jnp.float32) + p["bh"][g][None, :]
        return act(p["alpha"][g][None] * gx * gh
                   + p["beta1"][g][None] * gx + p["beta2"][g][None] * gh)

    f_g = gate(0, jax.nn.sigmoid)
    i_g = gate(1, jax.nn.sigmoid)
    o_g = gate(2, jax.nn.sigmoid)
    z_t = gate(3, jnp.tanh)
    cx = f_g * c0 + i_g * z_t
    hx = o_g * jnp.tanh(cx)
    out = (jnp.dot(hx.astype(jnp.bfloat16), p["wc"].astype(jnp.bfloat16),
                   preferred_element_type=jnp.float32) + p["bc"][None, :])
    return out, hx, cx


if __name__ == "__main__":
    B, D_IN, H, N_CLASS = 8, 256, 128, 10
    C_PAD = 128  # classifier output padded to one full lane width; sliced after the kernel

    key = jax.random.PRNGKey(0)
    kx, kp = jax.random.split(key)
    x = jax.random.normal(kx, (B, D_IN), jnp.float32)
    h0 = jnp.zeros((B, H), jnp.float32)   # module starts with self.h = zeros
    c0 = jnp.zeros((B, H), jnp.float32)   # module starts with self.c = zeros

    params = init_params(kp, D_IN, H, N_CLASS, C_PAD)

    logits, new_h, new_c = milstm_forward(x, h0, c0, params, N_CLASS)
    jax.block_until_ready((logits, new_h, new_c))

    ref_logits, ref_h, ref_c = milstm_reference(x, h0, c0, params, N_CLASS)
    assert jnp.allclose(logits, ref_logits, atol=2e-3, rtol=2e-3)
    assert jnp.allclose(new_h, ref_h, atol=2e-3, rtol=2e-3)
    assert jnp.allclose(new_c, ref_c, atol=2e-3, rtol=2e-3)

    print("KERNEL_OK")
</pallas_src>

<mosaic_0001>
module attributes {stable_mosaic.version = 11 : i64} {
  func.func @milstm_kernel(%arg0: memref<8x256xbf16, #tpu.memory_space<vmem>>, %arg1: memref<8x128xbf16, #tpu.memory_space<vmem>>, %arg2: memref<8x128xf32, #tpu.memory_space<vmem>>, %arg3: memref<256x512xbf16, #tpu.memory_space<vmem>>, %arg4: memref<128x512xbf16, #tpu.memory_space<vmem>>, %arg5: memref<1x512xf32, #tpu.memory_space<vmem>>, %arg6: memref<1x512xf32, #tpu.memory_space<vmem>>, %arg7: memref<1x512xf32, #tpu.memory_space<vmem>>, %arg8: memref<1x512xf32, #tpu.memory_space<vmem>>, %arg9: memref<1x512xf32, #tpu.memory_space<vmem>>, %arg10: memref<128x128xbf16, #tpu.memory_space<vmem>>, %arg11: memref<1x128xf32, #tpu.memory_space<vmem>>, %arg12: memref<8x128xf32, #tpu.memory_space<vmem>>, %arg13: memref<8x128xf32, #tpu.memory_space<vmem>>, %arg14: memref<8x128xf32, #tpu.memory_space<vmem>>) attributes {dimension_semantics = [], scalar_prefetch = 0 : i64, scratch_operands = 0 : i64, tpu.core_type = #tpu.core_type<tc>} {
    %c0 = arith.constant 0 : index
    %c0_0 = arith.constant 0 : index
    %0 = vector.load %arg0[%c0, %c0_0] : memref<8x256xbf16, #tpu.memory_space<vmem>>, vector<8x256xbf16>
    %c0_1 = arith.constant 0 : index
    %c0_2 = arith.constant 0 : index
    %1 = vector.load %arg3[%c0_1, %c0_2] : memref<256x512xbf16, #tpu.memory_space<vmem>>, vector<256x512xbf16>
    %cst = arith.constant dense<0.000000e+00> : vector<8x512xf32>
    %2 = tpu.matmul %0, %1, %cst {dimension_numbers = #tpu.dot_dimension_numbers<[1], [0], [0], [1], [0, 0, 1, 1], [], []>} : vector<8x256xbf16>, vector<256x512xbf16>, vector<8x512xf32> -> vector<8x512xf32>
    %c0_3 = arith.constant 0 : index
    %c0_4 = arith.constant 0 : index
    %3 = vector.load %arg5[%c0_3, %c0_4] : memref<1x512xf32, #tpu.memory_space<vmem>>, vector<1x512xf32>
    %4 = vector.broadcast %3 : vector<1x512xf32> to vector<8x512xf32>
    %5 = arith.addf %2, %4 : vector<8x512xf32>
    %c0_5 = arith.constant 0 : index
    %c0_6 = arith.constant 0 : index
    %6 = vector.load %arg1[%c0_5, %c0_6] : memref<8x128xbf16, #tpu.memory_space<vmem>>, vector<8x128xbf16>
    %c0_7 = arith.constant 0 : index
    %c0_8 = arith.constant 0 : index
    %7 = vector.load %arg4[%c0_7, %c0_8] : memref<128x512xbf16, #tpu.memory_space<vmem>>, vector<128x512xbf16>
    %cst_9 = arith.constant dense<0.000000e+00> : vector<8x512xf32>
    %8 = tpu.matmul %6, %7, %cst_9 {dimension_numbers = #tpu.dot_dimension_numbers<[1], [0], [0], [1], [0, 0, 1, 1], [], []>} : vector<8x128xbf16>, vector<128x512xbf16>, vector<8x512xf32> -> vector<8x512xf32>
    %c0_10 = arith.constant 0 : index
    %c0_11 = arith.constant 0 : index
    %9 = vector.load %arg6[%c0_10, %c0_11] : memref<1x512xf32, #tpu.memory_space<vmem>>, vector<1x512xf32>
    %10 = vector.broadcast %9 : vector<1x512xf32> to vector<8x512xf32>
    %11 = arith.addf %8, %10 : vector<8x512xf32>
    %c0_12 = arith.constant 0 : index
    %c0_13 = arith.constant 0 : index
    %12 = vector.load %arg7[%c0_12, %c0_13] : memref<1x512xf32, #tpu.memory_space<vmem>>, vector<1x512xf32>
    %13 = vector.broadcast %12 : vector<1x512xf32> to vector<8x512xf32>
    %14 = arith.mulf %13, %11 : vector<8x512xf32>
    %c0_14 = arith.constant 0 : index
    %c0_15 = arith.constant 0 : index
    %15 = vector.load %arg8[%c0_14, %c0_15] : memref<1x512xf32, #tpu.memory_space<vmem>>, vector<1x512xf32>
    %16 = vector.broadcast %15 : vector<1x512xf32> to vector<8x512xf32>
    %17 = arith.addf %14, %16 : vector<8x512xf32>
    %18 = arith.mulf %5, %17 : vector<8x512xf32>
    %c0_16 = arith.constant 0 : index
    %c0_17 = arith.constant 0 : index
    %19 = vector.load %arg9[%c0_16, %c0_17] : memref<1x512xf32, #tpu.memory_space<vmem>>, vector<1x512xf32>
    %20 = vector.broadcast %19 : vector<1x512xf32> to vector<8x512xf32>
    %21 = arith.mulf %20, %11 : vector<8x512xf32>
    %22 = arith.addf %18, %21 : vector<8x512xf32>
    %23 = vector.extract_strided_slice %22 {offsets = [0, 0], sizes = [8, 128], strides = [1, 1]} : vector<8x512xf32> to vector<8x128xf32>
    %24 = arith.negf %23 : vector<8x128xf32>
    %25 = math.exp %24 : vector<8x128xf32>
    %cst_18 = arith.constant 1.000000e+00 : f32
    %26 = vector.broadcast %cst_18 : f32 to vector<8x128xf32>
    %27 = arith.addf %26, %25 : vector<8x128xf32>
    %28 = arith.divf %26, %27 : vector<8x128xf32>
    %29 = vector.extract_strided_slice %22 {offsets = [0, 128], sizes = [8, 128], strides = [1, 1]} : vector<8x512xf32> to vector<8x128xf32>
    %30 = arith.negf %29 : vector<8x128xf32>
    %31 = math.exp %30 : vector<8x128xf32>
    %cst_19 = arith.constant 1.000000e+00 : f32
    %32 = vector.broadcast %cst_19 : f32 to vector<8x128xf32>
    %33 = arith.addf %32, %31 : vector<8x128xf32>
    %34 = arith.divf %32, %33 : vector<8x128xf32>
    %35 = vector.extract_strided_slice %22 {offsets = [0, 256], sizes = [8, 128], strides = [1, 1]} : vector<8x512xf32> to vector<8x128xf32>
    %36 = arith.negf %35 : vector<8x128xf32>
    %37 = math.exp %36 : vector<8x128xf32>
    %cst_20 = arith.constant 1.000000e+00 : f32
    %38 = vector.broadcast %cst_20 : f32 to vector<8x128xf32>
    %39 = arith.addf %38, %37 : vector<8x128xf32>
    %40 = arith.divf %38, %39 : vector<8x128xf32>
    %41 = vector.extract_strided_slice %22 {offsets = [0, 384], sizes = [8, 128], strides = [1, 1]} : vector<8x512xf32> to vector<8x128xf32>
    %42 = math.tanh %41 : vector<8x128xf32>
    %c0_21 = arith.constant 0 : index
    %c0_22 = arith.constant 0 : index
    %43 = vector.load %arg2[%c0_21, %c0_22] : memref<8x128xf32, #tpu.memory_space<vmem>>, vector<8x128xf32>
    %44 = arith.mulf %28, %43 : vector<8x128xf32>
    %45 = arith.mulf %34, %42 : vector<8x128xf32>
    %46 = arith.addf %44, %45 : vector<8x128xf32>
    %47 = math.tanh %46 : vector<8x128xf32>
    %48 = arith.mulf %40, %47 : vector<8x128xf32>
    %c0_23 = arith.constant 0 : index
    %c0_24 = arith.constant 0 : index
    %49 = vector.load %arg13[%c0_23, %c0_24] : memref<8x128xf32, #tpu.memory_space<vmem>>, vector<8x128xf32>
    tpu.vector_store %arg13[%c0_23, %c0_24], %48 {strides = array<i32>} : memref<8x128xf32, #tpu.memory_space<vmem>>, vector<8x128xf32>,
    %c0_25 = arith.constant 0 : index
    %c0_26 = arith.constant 0 : index
    %50 = vector.load %arg14[%c0_25, %c0_26] : memref<8x128xf32, #tpu.memory_space<vmem>>, vector<8x128xf32>
    tpu.vector_store %arg14[%c0_25, %c0_26], %46 {strides = array<i32>} : memref<8x128xf32, #tpu.memory_space<vmem>>, vector<8x128xf32>,
    %51 = arith.truncf %48 : vector<8x128xf32> to vector<8x128xbf16>
    %c0_27 = arith.constant 0 : index
    %c0_28 = arith.constant 0 : index
    %52 = vector.load %arg10[%c0_27, %c0_28] : memref<128x128xbf16, #tpu.memory_space<vmem>>, vector<128x128xbf16>
    %cst_29 = arith.constant dense<0.000000e+00> : vector<8x128xf32>
    %53 = tpu.matmul %51, %52, %cst_29 {dimension_numbers = #tpu.dot_dimension_numbers<[1], [0], [0], [1], [0, 0, 1, 1], [], []>} : vector<8x128xbf16>, vector<128x128xbf16>, vector<8x128xf32> -> vector<8x128xf32>
    %c0_30 = arith.constant 0 : index
    %c0_31 = arith.constant 0 : index
    %54 = vector.load %arg11[%c0_30, %c0_31] : memref<1x128xf32, #tpu.memory_space<vmem>>, vector<1x128xf32>
    %55 = vector.broadcast %54 : vector<1x128xf32> to vector<8x128xf32>
    %56 = arith.addf %53, %55 : vector<8x128xf32>
    %c0_32 = arith.constant 0 : index
    %c0_33 = arith.constant 0 : index
    %57 = vector.load %arg12[%c0_32, %c0_33] : memref<8x128xf32, #tpu.memory_space<vmem>>, vector<8x128xf32>
    tpu.vector_store %arg12[%c0_32, %c0_33], %56 {strides = array<i32>} : memref<8x128xf32, #tpu.memory_space<vmem>>, vector<8x128xf32>,
    return
  }
}

</mosaic_0001>

<llo_original>
// kernel: tpu_custom_call.1
$region0: #{tpu_custom_call.1}
  #allocation0 [shape = 'u32[]', space=smem, size = 0x4, offset = 0x4, fixed_abs, tag = 'smem constant byte address 0x4 - core index']
  #allocation1 [shape = 'u32[144,128]{1,0:T(1,128)}', space=vmem, size = 0x12000, scoped, tag = 'internal scratch']
  %s0 = inlined_call_operand.hbm [shape: bf16[8,256], index: 0, kind: input, shape index: {}]
  %s1 = inlined_call_operand.hbm [shape: bf16[8,128], index: 1, kind: input, shape index: {}]
  %s2 = inlined_call_operand.hbm [shape: f32[8,128], index: 2, kind: input, shape index: {}]
  %s3 = inlined_call_operand.hbm [shape: bf16[256,512], index: 3, kind: input, shape index: {}]
  %s4 = inlined_call_operand.hbm [shape: bf16[128,512], index: 4, kind: input, shape index: {}]
  %s5 = inlined_call_operand.vmem [shape: f32[1,512], index: 5, kind: input, shape index: {}]
  %s6 = inlined_call_operand.vmem [shape: f32[1,512], index: 6, kind: input, shape index: {}]
  %s7 = inlined_call_operand.vmem [shape: f32[1,512], index: 7, kind: input, shape index: {}]
  %s8 = inlined_call_operand.vmem [shape: f32[1,512], index: 8, kind: input, shape index: {}]
  %s9 = inlined_call_operand.vmem [shape: f32[1,512], index: 9, kind: input, shape index: {}]
  %s10 = inlined_call_operand.hbm [shape: bf16[128,128], index: 10, kind: input, shape index: {}]
  %s11 = inlined_call_operand.vmem [shape: f32[1,128], index: 11, kind: input, shape index: {}]
  %s12 = inlined_call_operand.hbm [shape: f32[8,128], index: 12, kind: output, shape index: {0}]
  %s13 = inlined_call_operand.hbm [shape: f32[8,128], index: 13, kind: output, shape index: {1}]
  %s14 = inlined_call_operand.hbm [shape: f32[8,128], index: 14, kind: output, shape index: {2}]
  %15 = xla_tuple %s12, %s13, %s14
  %s16 = sld [smem:[#allocation0]]
  $region98: #{tpu_custom_call.1} parent=0
    _
  %s18 = ssub.s32 1, %s16
  %s19 = scalar_select 0, %s18, %s16
  $region1: #{tpu_custom_call.1} parent=0
    #allocation2 [shape = 'u8[4096]{0}', space=vmem, size = 0x1000, scoped, tag = 'input window, operand 0, single buffered']
    #allocation3 [shape = 's32[1]{0}', space=sflag, size = 0x4, scoped, tag = 'scoped memory for tpu_custom_call.1']
    #allocation4 [shape = 's32[1]{0}', space=sflag, size = 0x4, scoped, tag = 'scoped memory for tpu_custom_call.1']
    #allocation5 [shape = 'u8[2048]{0}', space=vmem, size = 0x800, scoped, tag = 'input window, operand 1, single buffered']
    #allocation6 [shape = 's32[1]{0}', space=sflag, size = 0x4, scoped, tag = 'scoped memory for tpu_custom_call.1']
    #allocation7 [shape = 'u8[4096]{0}', space=vmem, size = 0x1000, scoped, tag = 'input window, operand 2, single buffered']
    #allocation8 [shape = 'u8[262144]{0}', space=vmem, size = 0x40000, scoped, tag = 'input window, operand 3, single buffered']
    #allocation9 [shape = 's32[1]{0}', space=sflag, size = 0x4, scoped, tag = 'scoped memory for tpu_custom_call.1']
    #allocation10 [shape = 'u8[131072]{0}', space=vmem, size = 0x20000, scoped, tag = 'input window, operand 4, single buffered']
    #allocation11 [shape = 'u8[32768]{0}', space=vmem, size = 0x8000, scoped, tag = 'input window, operand 10, single buffered']
    #allocation12 [shape = 's32[1]{0}', space=sflag, size = 0x4, scoped, tag = 'scoped memory for tpu_custom_call.1']
    #allocation13 [shape = 'u8[4096]{0}', space=vmem, size = 0x1000, scoped, tag = 'output window, operand 0, single buffered']
    #allocation14 [shape = 'u8[4096]{0}', space=vmem, size = 0x1000, scoped, tag = 'output window, operand 1, single buffered']
    #allocation15 [shape = 's32[1]{0}', space=sflag, size = 0x4, scoped, tag = 'scoped memory for tpu_custom_call.1']
    #allocation16 [shape = 'u8[4096]{0}', space=vmem, size = 0x1000, scoped, tag = 'output window, operand 2, single buffered']
    %20 = vsyncpa [#allocation3], 0
    %21 = vsyncpa [#allocation6], 0
    %22 = vsyncpa [#allocation9], 0
    %23 = vsyncpa [#allocation12], 0
    %24 = vsyncpa [#allocation4], 0
    %25 = vsyncpa [#allocation15], 0
    // Predicated region
    $region2: #{tpu_custom_call.1} parent=1 // pred_check
      _
    $region3: #{tpu_custom_call.1} parent=1 // pred_check_branch
      %27 = sbr.rel (0) target = $region5
    $region4: #{tpu_custom_call.1} parent=1 // pred_region
      %s29 = ssub.s32 128, 128
      %30 = vsyncadd [#allocation3], %s29
      %s32 = sshll.u32 [#allocation2], 4
      %s33 = int_to_ptr.vmem [resolvable:$true] %s32
      %35 = dma.hbm_to_vmem [thread:$0]  %s0, 128, %s33, [#allocation3]
    $region5: #{tpu_custom_call.1} parent=1 // pred_fallthru
      _
    // Predicated region
    $region6: #{tpu_custom_call.1} parent=1 // pred_check
      _
    $region7: #{tpu_custom_call.1} parent=1 // pred_check_branch
      %37 = sbr.rel (0) target = $region9
    $region8: #{tpu_custom_call.1} parent=1 // pred_region
      %s39 = ssub.s32 64, 64
      %40 = vsyncadd [#allocation6], %s39
      %s42 = sshll.u32 [#allocation5], 4
      %s43 = int_to_ptr.vmem [resolvable:$true] %s42
      %45 = dma.hbm_to_vmem [thread:$0]  %s1, 64, %s43, [#allocation6]
    $region9: #{tpu_custom_call.1} parent=1 // pred_fallthru
      _
    // Predicated region
    $region10: #{tpu_custom_call.1} parent=1 // pred_check
      _
    $region11: #{tpu_custom_call.1} parent=1 // pred_check_branch
      %47 = sbr.rel (0) target = $region13
    $region12: #{tpu_custom_call.1} parent=1 // pred_region
      %s49 = ssub.s32 128, 128
      %50 = vsyncadd [#allocation6], %s49
      %s52 = sshll.u32 [#allocation7], 4
      %s53 = int_to_ptr.vmem [resolvable:$true] %s52
      %55 = dma.hbm_to_vmem [thread:$0]  %s2, 128, %s53, [#allocation6]
    $region13: #{tpu_custom_call.1} parent=1 // pred_fallthru
      _
    // Predicated region
    $region14: #{tpu_custom_call.1} parent=1 // pred_check
      _
    $region15: #{tpu_custom_call.1} parent=1 // pred_check_branch
      %57 = sbr.rel (0) target = $region17
    $region16: #{tpu_custom_call.1} parent=1 // pred_region
      %s59 = ssub.s32 8192, 8192
      %60 = vsyncadd [#allocation9], %s59
      %s61 = sshll.u32 [#allocation8], 4
      %s62 = int_to_ptr.vmem [resolvable:$true] %s61
      %67 = dma.hbm_to_vmem [thread:$0]  %s3, 8192, %s62, [#allocation9], 256, 256, 16
    $region17: #{tpu_custom_call.1} parent=1 // pred_fallthru
      _
    // Predicated region
    $region18: #{tpu_custom_call.1} parent=1 // pred_check
      _
    $region19: #{tpu_custom_call.1} parent=1 // pred_check_branch
      %69 = sbr.rel (0) target = $region21
    $region20: #{tpu_custom_call.1} parent=1 // pred_region
      %s71 = ssub.s32 4096, 4096
      %72 = vsyncadd [#allocation9], %s71
      %s73 = sshll.u32 [#allocation10], 4
      %s74 = int_to_ptr.vmem [resolvable:$true] %s73
      %79 = dma.hbm_to_vmem [thread:$0]  %s4, 4096, %s74, [#allocation9], 256, 256, 16
    $region21: #{tpu_custom_call.1} parent=1 // pred_fallthru
      _
    // Predicated region
    $region22: #{tpu_custom_call.1} parent=1 // pred_check
      _
    $region23: #{tpu_custom_call.1} parent=1 // pred_check_branch
      %81 = sbr.rel (0) target = $region25
    $region24: #{tpu_custom_call.1} parent=1 // pred_region
      _
    $region25: #{tpu_custom_call.1} parent=1 // pred_fallthru
      _
    // Predicated region
    $region26: #{tpu_custom_call.1} parent=1 // pred_check
      _
    $region27: #{tpu_custom_call.1} parent=1 // pred_check_branch
      %83 = sbr.rel (0) target = $region29
    $region28: #{tpu_custom_call.1} parent=1 // pred_region
      _
    $region29: #{tpu_custom_call.1} parent=1 // pred_fallthru
      _
    // Predicated region
    $region30: #{tpu_custom_call.1} parent=1 // pred_check
      _
    $region31: #{tpu_custom_call.1} parent=1 // pred_check_branch
      %85 = sbr.rel (0) target = $region33
    $region32: #{tpu_custom_call.1} parent=1 // pred_region
      _
    $region33: #{tpu_custom_call.1} parent=1 // pred_fallthru
      _
    // Predicated region
    $region34: #{tpu_custom_call.1} parent=1 // pred_check
      _
    $region35: #{tpu_custom_call.1} parent=1 // pred_check_branch
      %87 = sbr.rel (0) target = $region37
    $region36: #{tpu_custom_call.1} parent=1 // pred_region
      _
    $region37: #{tpu_custom_call.1} parent=1 // pred_fallthru
      _
    // Predicated region
    $region38: #{tpu_custom_call.1} parent=1 // pred_check
      _
    $region39: #{tpu_custom_call.1} parent=1 // pred_check_branch
      %89 = sbr.rel (0) target = $region41
    $region40: #{tpu_custom_call.1} parent=1 // pred_region
      _
    $region41: #{tpu_custom_call.1} parent=1 // pred_fallthru
      _
    // Predicated region
    $region42: #{tpu_custom_call.1} parent=1 // pred_check
      _
    $region43: #{tpu_custom_call.1} parent=1 // pred_check_branch
      %91 = sbr.rel (0) target = $region45
    $region44: #{tpu_custom_call.1} parent=1 // pred_region
      %s93 = ssub.s32 1024, 1024
      %94 = vsyncadd [#allocation12], %s93
      %s95 = sshll.u32 [#allocation11], 4
      %s96 = int_to_ptr.vmem [resolvable:$true] %s95
      %101 = dma.hbm_to_vmem [thread:$0]  %s10, 1024, %s96, [#allocation12], 64, 64, 4
    $region45: #{tpu_custom_call.1} parent=1 // pred_fallthru
      _
    // Predicated region
    $region46: #{tpu_custom_call.1} parent=1 // pred_check
      _
    $region47: #{tpu_custom_call.1} parent=1 // pred_check_branch
      %103 = sbr.rel (0) target = $region49
    $region48: #{tpu_custom_call.1} parent=1 // pred_region
      _
    $region49: #{tpu_custom_call.1} parent=1 // pred_fallthru
      _
    // Predicated region
    $region50: #{tpu_custom_call.1} parent=1 // pred_check
      _
    $region51: #{tpu_custom_call.1} parent=1 // pred_check_branch
      %105 = sbr.rel (0) target = $region53
    $region52: #{tpu_custom_call.1} parent=1 // pred_region
      %106 = dma.done [#allocation3], 128
    $region53: #{tpu_custom_call.1} parent=1 // pred_fallthru
      _
    // Predicated region
    $region54: #{tpu_custom_call.1} parent=1 // pred_check
      _
    $region55: #{tpu_custom_call.1} parent=1 // pred_check_branch
      %108 = sbr.rel (0) target = $region57
    $region56: #{tpu_custom_call.1} parent=1 // pred_region
      %109 = dma.done [#allocation6], 64
    $region57: #{tpu_custom_call.1} parent=1 // pred_fallthru
      _
    // Predicated region
    $region58: #{tpu_custom_call.1} parent=1 // pred_check
      _
    $region59: #{tpu_custom_call.1} parent=1 // pred_check_branch
      %111 = sbr.rel (0) target = $region61
    $region60: #{tpu_custom_call.1} parent=1 // pred_region
      %112 = dma.done [#allocation6], 128
    $region61: #{tpu_custom_call.1} parent=1 // pred_fallthru
      _
    // Predicated region
    $region62: #{tpu_custom_call.1} parent=1 // pred_check
      _
    $region63: #{tpu_custom_call.1} parent=1 // pred_check_branch
      %114 = sbr.rel (0) target = $region65
    $region64: #{tpu_custom_call.1} parent=1 // pred_region
      %115 = dma.done [#allocation9], 8192
    $region65: #{tpu_custom_call.1} parent=1 // pred_fallthru
      _
    // Predicated region
    $region66: #{tpu_custom_call.1} parent=1 // pred_check
      _
    $region67: #{tpu_custom_call.1} parent=1 // pred_check_branch
      %117 = sbr.rel (0) target = $region69
    $region68: #{tpu_custom_call.1} parent=1 // pred_region
      %118 = dma.done [#allocation9], 4096
    $region69: #{tpu_custom_call.1} parent=1 // pred_fallthru
      _
    // Predicated region
    $region70: #{tpu_custom_call.1} parent=1 // pred_check
      _
    $region71: #{tpu_custom_call.1} parent=1 // pred_check_branch
      %120 = sbr.rel (0) target = $region73
    $region72: #{tpu_custom_call.1} parent=1 // pred_region
      %121 = dma.done [#allocation12], 1024
    $region73: #{tpu_custom_call.1} parent=1 // pred_fallthru
      _
    %v123 = vld [vmem:[#allocation2] sm:$0xff]
    %v124 = vld [vmem:[#allocation8] sm:$0xff]
    %v125 = vld [vmem:[#allocation8 + $0x8] sm:$0xff]
    %v126 = vld [vmem:[#allocation8 + $0x10] sm:$0xff]
    %v127 = vld [vmem:[#allocation8 + $0x18] sm:$0xff]
    %v128 = vld [vmem:[#allocation8 + $0x20] sm:$0xff]
    %v129 = vld [vmem:[#allocation8 + $0x28] sm:$0xff]
    %v130 = vld [vmem:[#allocation8 + $0x30] sm:$0xff]
    %v131 = vld [vmem:[#allocation8 + $0x38] sm:$0xff]
    %v132 = vld [vmem:[#allocation8 + $0x40] sm:$0xff]
    %v133 = vld [vmem:[#allocation8 + $0x48] sm:$0xff]
    %v134 = vld [vmem:[#allocation8 + $0x50] sm:$0xff]
    %v135 = vld [vmem:[#allocation8 + $0x58] sm:$0xff]
    %v136 = vld [vmem:[#allocation8 + $0x60] sm:$0xff]
    %v137 = vld [vmem:[#allocation8 + $0x68] sm:$0xff]
    %v138 = vld [vmem:[#allocation8 + $0x70] sm:$0xff]
    %v139 = vld [vmem:[#allocation8 + $0x78] sm:$0xff]
    %v140 = vld [vmem:[#allocation8 + $0x80] sm:$0xff]
    %v141 = vld [vmem:[#allocation8 + $0x88] sm:$0xff]
    %v142 = vld [vmem:[#allocation8 + $0x90] sm:$0xff]
    %v143 = vld [vmem:[#allocation8 + $0x98] sm:$0xff]
    %v144 = vld [vmem:[#allocation8 + $0xa0] sm:$0xff]
    %v145 = vld [vmem:[#allocation8 + $0xa8] sm:$0xff]
    %v146 = vld [vmem:[#allocation8 + $0xb0] sm:$0xff]
    %v147 = vld [vmem:[#allocation8 + $0xb8] sm:$0xff]
    %v148 = vld [vmem:[#allocation8 + $0xc0] sm:$0xff]
    %v149 = vld [vmem:[#allocation8 + $0xc8] sm:$0xff]
    %v150 = vld [vmem:[#allocation8 + $0xd0] sm:$0xff]
    %v151 = vld [vmem:[#allocation8 + $0xd8] sm:$0xff]
    %v152 = vld [vmem:[#allocation8 + $0xe0] sm:$0xff]
    %v153 = vld [vmem:[#allocation8 + $0xe8] sm:$0xff]
    %v154 = vld [vmem:[#allocation8 + $0xf0] sm:$0xff]
    %v155 = vld [vmem:[#allocation8 + $0xf8] sm:$0xff]
    %v156 = vld [vmem:[#allocation8 + $0x100] sm:$0xff]
    %v157 = vld [vmem:[#allocation8 + $0x108] sm:$0xff]
    %v158 = vld [vmem:[#allocation8 + $0x110] sm:$0xff]
    %v159 = vld [vmem:[#allocation8 + $0x118] sm:$0xff]
    %v160 = vld [vmem:[#allocation8 + $0x120] sm:$0xff]
    %v161 = vld [vmem:[#allocation8 + $0x128] sm:$0xff]
    %v162 = vld [vmem:[#allocation8 + $0x130] sm:$0xff]
    %v163 = vld [vmem:[#allocation8 + $0x138] sm:$0xff]
    %v164 = vld [vmem:[#allocation8 + $0x140] sm:$0xff]
    %v165 = vld [vmem:[#allocation8 + $0x148] sm:$0xff]
    %v166 = vld [vmem:[#allocation8 + $0x150] sm:$0xff]
    %v167 = vld [vmem:[#allocation8 + $0x158] sm:$0xff]
    %v168 = vld [vmem:[#allocation8 + $0x160] sm:$0xff]
    %v169 = vld [vmem:[#allocation8 + $0x168] sm:$0xff]
    %v170 = vld [vmem:[#allocation8 + $0x170] sm:$0xff]
    %v171 = vld [vmem:[#allocation8 + $0x178] sm:$0xff]
    %v172 = vld [vmem:[#allocation8 + $0x180] sm:$0xff]
    %v173 = vld [vmem:[#allocation8 + $0x188] sm:$0xff]
    %v174 = vld [vmem:[#allocation8 + $0x190] sm:$0xff]
    %v175 = vld [vmem:[#allocation8 + $0x198] sm:$0xff]
    %v176 = vld [vmem:[#allocation8 + $0x1a0] sm:$0xff]
    %v177 = vld [vmem:[#allocation8 + $0x1a8] sm:$0xff]
    %v178 = vld [vmem:[#allocation8 + $0x1b0] sm:$0xff]
    %v179 = vld [vmem:[#allocation8 + $0x1b8] sm:$0xff]
    %v180 = vld [vmem:[#allocation8 + $0x1c0] sm:$0xff]
    %v181 = vld [vmem:[#allocation8 + $0x1c8] sm:$0xff]
    %v182 = vld [vmem:[#allocation8 + $0x1d0] sm:$0xff]
    %v183 = vld [vmem:[#allocation8 + $0x1d8] sm:$0xff]
    %v184 = vld [vmem:[#allocation8 + $0x1e0] sm:$0xff]
    %v185 = vld [vmem:[#allocation8 + $0x1e8] sm:$0xff]
    %v186 = vld [vmem:[#allocation8 + $0x1f0] sm:$0xff]
    %v187 = vld [vmem:[#allocation8 + $0x1f8] sm:$0xff]
    %v188 = vld [vmem:[%s5] sm:$0xf]
    %v190 = vlaneseq
    %v191 = vshrl.u32 %v190, 7
    %v192 = vsub.s32 0, %v191
    %v193 = vrot.slane %v188, %v192
    %v194 = vlaneseq
    %v195 = vshrl.u32 %v194, 7
    %v196 = vsub.s32 1, %v195
    %v197 = vrot.slane %v188, %v196
    %v198 = vlaneseq
    %v199 = vshrl.u32 %v198, 7
    %v200 = vsub.s32 2, %v199
    %v201 = vrot.slane %v188, %v200
    %v202 = vlaneseq
    %v203 = vshrl.u32 %v202, 7
    %v204 = vsub.s32 3, %v203
    %v205 = vrot.slane %v188, %v204
    %v211 = vunpack.c.l.b16 %v123
    %v212 = vunpack.c.h.b16 %v123
    %v213 = vpack.c.b16 %v211, %v211
    %v214 = vpack.c.b16 %v212, %v212
    %v281 = vunpack.c.l.b16 %v124
    %v282 = vunpack.c.h.b16 %v124
    %v283 = vunpack.c.l.b16 %v125
    %v284 = vunpack.c.h.b16 %v125
    %v285 = vunpack.c.l.b16 %v126
    %v286 = vunpack.c.h.b16 %v126
    %v287 = vunpack.c.l.b16 %v127
    %v288 = vunpack.c.h.b16 %v127
    %v289 = vunpack.c.l.b16 %v128
    %v290 = vunpack.c.h.b16 %v128
    %v291 = vunpack.c.l.b16 %v129
    %v292 = vunpack.c.h.b16 %v129
    %v293 = vunpack.c.l.b16 %v130
    %v294 = vunpack.c.h.b16 %v130
    %v295 = vunpack.c.l.b16 %v131
    %v296 = vunpack.c.h.b16 %v131
    %v297 = vunpack.c.l.b16 %v132
    %v298 = vunpack.c.h.b16 %v132
    %v299 = vunpack.c.l.b16 %v133
    %v300 = vunpack.c.h.b16 %v133
    %v301 = vunpack.c.l.b16 %v134
    %v302 = vunpack.c.h.b16 %v134
    %v303 = vunpack.c.l.b16 %v135
    %v304 = vunpack.c.h.b16 %v135
    %v305 = vunpack.c.l.b16 %v136
    %v306 = vunpack.c.h.b16 %v136
    %v307 = vunpack.c.l.b16 %v137
    %v308 = vunpack.c.h.b16 %v137
    %v309 = vunpack.c.l.b16 %v138
    %v310 = vunpack.c.h.b16 %v138
    %v311 = vunpack.c.l.b16 %v139
    %v312 = vunpack.c.h.b16 %v139
    %v313 = vunpack.c.l.b16 %v140
    %v314 = vunpack.c.h.b16 %v140
    %v315 = vunpack.c.l.b16 %v141
    %v316 = vunpack.c.h.b16 %v141
    %v317 = vunpack.c.l.b16 %v142
    %v318 = vunpack.c.h.b16 %v142
    %v319 = vunpack.c.l.b16 %v143
    %v320 = vunpack.c.h.b16 %v143
    %v321 = vunpack.c.l.b16 %v144
    %v322 = vunpack.c.h.b16 %v144
    %v323 = vunpack.c.l.b16 %v145
    %v324 = vunpack.c.h.b16 %v145
    %v325 = vunpack.c.l.b16 %v146
    %v326 = vunpack.c.h.b16 %v146
    %v327 = vunpack.c.l.b16 %v147
    %v328 = vunpack.c.h.b16 %v147
    %v329 = vunpack.c.l.b16 %v148
    %v330 = vunpack.c.h.b16 %v148
    %v331 = vunpack.c.l.b16 %v149
    %v332 = vunpack.c.h.b16 %v149
    %v333 = vunpack.c.l.b16 %v150
    %v334 = vunpack.c.h.b16 %v150
    %v335 = vunpack.c.l.b16 %v151
    %v336 = vunpack.c.h.b16 %v151
    %v337 = vunpack.c.l.b16 %v152
    %v338 = vunpack.c.h.b16 %v152
    %v339 = vunpack.c.l.b16 %v153
    %v340 = vunpack.c.h.b16 %v153
    %v341 = vunpack.c.l.b16 %v154
    %v342 = vunpack.c.h.b16 %v154
    %v343 = vunpack.c.l.b16 %v155
    %v344 = vunpack.c.h.b16 %v155
    %v345 = vunpack.c.l.b16 %v156
    %v346 = vunpack.c.h.b16 %v156
    %v347 = vunpack.c.l.b16 %v157
    %v348 = vunpack.c.h.b16 %v157
    %v349 = vunpack.c.l.b16 %v158
    %v350 = vunpack.c.h.b16 %v158
    %v351 = vunpack.c.l.b16 %v159
    %v352 = vunpack.c.h.b16 %v159
    %v353 = vunpack.c.l.b16 %v160
    %v354 = vunpack.c.h.b16 %v160
    %v355 = vunpack.c.l.b16 %v161
    %v356 = vunpack.c.h.b16 %v161
    %v357 = vunpack.c.l.b16 %v162
    %v358 = vunpack.c.h.b16 %v162
    %v359 = vunpack.c.l.b16 %v163
    %v360 = vunpack.c.h.b16 %v163
    %v361 = vunpack.c.l.b16 %v164
    %v362 = vunpack.c.h.b16 %v164
    %v363 = vunpack.c.l.b16 %v165
    %v364 = vunpack.c.h.b16 %v165
    %v365 = vunpack.c.l.b16 %v166
    %v366 = vunpack.c.h.b16 %v166
    %v367 = vunpack.c.l.b16 %v167
    %v368 = vunpack.c.h.b16 %v167
    %v369 = vunpack.c.l.b16 %v168
    %v370 = vunpack.c.h.b16 %v168
    %v371 = vunpack.c.l.b16 %v169
    %v372 = vunpack.c.h.b16 %v169
    %v373 = vunpack.c.l.b16 %v170
    %v374 = vunpack.c.h.b16 %v170
    %v375 = vunpack.c.l.b16 %v171
    %v376 = vunpack.c.h.b16 %v171
    %v377 = vunpack.c.l.b16 %v172
    %v378 = vunpack.c.h.b16 %v172
    %v379 = vunpack.c.l.b16 %v173
    %v380 = vunpack.c.h.b16 %v173
    %v381 = vunpack.c.l.b16 %v174
    %v382 = vunpack.c.h.b16 %v174
    %v383 = vunpack.c.l.b16 %v175
    %v384 = vunpack.c.h.b16 %v175
    %v385 = vunpack.c.l.b16 %v176
    %v386 = vunpack.c.h.b16 %v176
    %v387 = vunpack.c.l.b16 %v177
    %v388 = vunpack.c.h.b16 %v177
    %v389 = vunpack.c.l.b16 %v178
    %v390 = vunpack.c.h.b16 %v178
    %v391 = vunpack.c.l.b16 %v179
    %v392 = vunpack.c.h.b16 %v179
    %v393 = vunpack.c.l.b16 %v180
    %v394 = vunpack.c.h.b16 %v180
    %v395 = vunpack.c.l.b16 %v181
    %v396 = vunpack.c.h.b16 %v181
    %v397 = vunpack.c.l.b16 %v182
    %v398 = vunpack.c.h.b16 %v182
    %v399 = vunpack.c.l.b16 %v183
    %v400 = vunpack.c.h.b16 %v183
    %v401 = vunpack.c.l.b16 %v184
    %v402 = vunpack.c.h.b16 %v184
    %v403 = vunpack.c.l.b16 %v185
    %v404 = vunpack.c.h.b16 %v185
    %v405 = vunpack.c.l.b16 %v186
    %v406 = vunpack.c.h.b16 %v186
    %v407 = vunpack.c.l.b16 %v187
    %v408 = vunpack.c.h.b16 %v187
    %v409 = vpack.c.b16 %v285, %v281
    %v410 = vpack.c.b16 %v286, %v282
    %v411 = vpack.c.b16 %v287, %v283
    %v412 = vpack.c.b16 %v288, %v284
    %v413 = vpack.c.b16 %v293, %v289
    %v414 = vpack.c.b16 %v294, %v290
    %v415 = vpack.c.b16 %v295, %v291
    %v416 = vpack.c.b16 %v296, %v292
    %v417 = vpack.c.b16 %v301, %v297
    %v418 = vpack.c.b16 %v302, %v298
    %v419 = vpack.c.b16 %v303, %v299
    %v420 = vpack.c.b16 %v304, %v300
    %v421 = vpack.c.b16 %v309, %v305
    %v422 = vpack.c.b16 %v310, %v306
    %v423 = vpack.c.b16 %v311, %v307
    %v424 = vpack.c.b16 %v312, %v308
    %v425 = vpack.c.b16 %v317, %v313
    %v426 = vpack.c.b16 %v318, %v314
    %v427 = vpack.c.b16 %v319, %v315
    %v428 = vpack.c.b16 %v320, %v316
    %v429 = vpack.c.b16 %v325, %v321
    %v430 = vpack.c.b16 %v326, %v322
    %v431 = vpack.c.b16 %v327, %v323
    %v432 = vpack.c.b16 %v328, %v324
    %v433 = vpack.c.b16 %v333, %v329
    %v434 = vpack.c.b16 %v334, %v330
    %v435 = vpack.c.b16 %v335, %v331
    %v436 = vpack.c.b16 %v336, %v332
    %v437 = vpack.c.b16 %v341, %v337
    %v438 = vpack.c.b16 %v342, %v338
    %v439 = vpack.c.b16 %v343, %v339
    %v440 = vpack.c.b16 %v344, %v340
    %v441 = vpack.c.b16 %v349, %v345
    %v442 = vpack.c.b16 %v350, %v346
    %v443 = vpack.c.b16 %v351, %v347
    %v444 = vpack.c.b16 %v352, %v348
    %v445 = vpack.c.b16 %v357, %v353
    %v446 = vpack.c.b16 %v358, %v354
    %v447 = vpack.c.b16 %v359, %v355
    %v448 = vpack.c.b16 %v360, %v356
    %v449 = vpack.c.b16 %v365, %v361
    %v450 = vpack.c.b16 %v366, %v362
    %v451 = vpack.c.b16 %v367, %v363
    %v452 = vpack.c.b16 %v368, %v364
    %v453 = vpack.c.b16 %v373, %v369
    %v454 = vpack.c.b16 %v374, %v370
    %v455 = vpack.c.b16 %v375, %v371
    %v456 = vpack.c.b16 %v376, %v372
    %v457 = vpack.c.b16 %v381, %v377
    %v458 = vpack.c.b16 %v382, %v378
    %v459 = vpack.c.b16 %v383, %v379
    %v460 = vpack.c.b16 %v384, %v380
    %v461 = vpack.c.b16 %v389, %v385
    %v462 = vpack.c.b16 %v390, %v386
    %v463 = vpack.c.b16 %v391, %v387
    %v464 = vpack.c.b16 %v392, %v388
    %v465 = vpack.c.b16 %v397, %v393
    %v466 = vpack.c.b16 %v398, %v394
    %v467 = vpack.c.b16 %v399, %v395
    %v468 = vpack.c.b16 %v400, %v396
    %v469 = vpack.c.b16 %v405, %v401
    %v470 = vpack.c.b16 %v406, %v402
    %v471 = vpack.c.b16 %v407, %v403
    %v472 = vpack.c.b16 %v408, %v404
    %537 = vmatprep.subr.bf16.mxu0 %v410
    %538 = vmatpush1.bf16.msra.mxu0 %v409
    %539 = vmatprep.subr.bf16.mxu0 %v414
    %540 = vmatpush1.bf16.msra.mxu0 %v413
    %541 = vmatprep.subr.bf16.mxu0 %v418
    %542 = vmatpush1.bf16.msra.mxu0 %v417
    %543 = vmatprep.subr.bf16.mxu0 %v422
    %544 = vmatpush1.bf16.msra.mxu0 %v421
    %545 = vmatprep.subr.bf16.mxu0 %v426
    %546 = vmatpush1.bf16.msra.mxu0 %v425
    %547 = vmatprep.subr.bf16.mxu0 %v430
    %548 = vmatpush1.bf16.msra.mxu0 %v429
    %549 = vmatprep.subr.bf16.mxu0 %v434
    %550 = vmatpush1.bf16.msra.mxu0 %v433
    %551 = vmatprep.subr.bf16.mxu0 %v438
    %552 = vmatpush1.bf16.msra.mxu0 %v437
    %553 = vmatprep.subr.bf16.mxu0 %v442
    %554 = vmatpush1.bf16.msra.mxu0 %v441
    %555 = vmatprep.subr.bf16.mxu0 %v446
    %556 = vmatpush1.bf16.msra.mxu0 %v445
    %557 = vmatprep.subr.bf16.mxu0 %v450
    %558 = vmatpush1.bf16.msra.mxu0 %v449
    %559 = vmatprep.subr.bf16.mxu0 %v454
    %560 = vmatpush1.bf16.msra.mxu0 %v453
    %561 = vmatprep.subr.bf16.mxu0 %v458
    %562 = vmatpush1.bf16.msra.mxu0 %v457
    %563 = vmatprep.subr.bf16.mxu0 %v462
    %564 = vmatpush1.bf16.msra.mxu0 %v461
    %565 = vmatprep.subr.bf16.mxu0 %v466
    %566 = vmatpush1.bf16.msra.mxu0 %v465
    %567 = vmatprep.subr.bf16.mxu0 %v470
    %568 = vmatpush1.bf16.msra.mxu0 %v469
    %569 = vmatprep.mubr.bf16.mxu0 %v214
    %570 = vmatmul.mubr.bf16.gmra.mrb[0].mxu0 %v213
    %v571 = vpop.f32.mrb[0].mxu0
    %v572 = vadd.f32 %v193, %v571
    %v573 = vpop.f32.mrb[0].mxu0
    %v574 = vadd.f32 %v197, %v573
    %v575 = vpop.f32.mrb[0].mxu0
    %v576 = vpop.f32.mrb[0].mxu0
    %577 = vdwg.mxu0
    %578 = vmatprep.subr.bf16.mxu0 %v412
    %579 = vmatpush1.bf16.msra.mxu0 %v411
    %580 = vmatprep.subr.bf16.mxu0 %v416
    %581 = vmatpush1.bf16.msra.mxu0 %v415
    %582 = vmatprep.subr.bf16.mxu0 %v420
    %583 = vmatpush1.bf16.msra.mxu0 %v419
    %584 = vmatprep.subr.bf16.mxu0 %v424
    %585 = vmatpush1.bf16.msra.mxu0 %v423
    %586 = vmatprep.subr.bf16.mxu0 %v428
    %587 = vmatpush1.bf16.msra.mxu0 %v427
    %588 = vmatprep.subr.bf16.mxu0 %v432
    %589 = vmatpush1.bf16.msra.mxu0 %v431
    %590 = vmatprep.subr.bf16.mxu0 %v436
    %591 = vmatpush1.bf16.msra.mxu0 %v435
    %592 = vmatprep.subr.bf16.mxu0 %v440
    %593 = vmatpush1.bf16.msra.mxu0 %v439
    %594 = vmatprep.subr.bf16.mxu0 %v444
    %595 = vmatpush1.bf16.msra.mxu0 %v443
    %596 = vmatprep.subr.bf16.mxu0 %v448
    %597 = vmatpush1.bf16.msra.mxu0 %v447
    %598 = vmatprep.subr.bf16.mxu0 %v452
    %599 = vmatpush1.bf16.msra.mxu0 %v451
    %600 = vmatprep.subr.bf16.mxu0 %v456
    %601 = vmatpush1.bf16.msra.mxu0 %v455
    %602 = vmatprep.subr.bf16.mxu0 %v460
    %603 = vmatpush1.bf16.msra.mxu0 %v459
    %604 = vmatprep.subr.bf16.mxu0 %v464
    %605 = vmatpush1.bf16.msra.mxu0 %v463
    %606 = vmatprep.subr.bf16.mxu0 %v468
    %607 = vmatpush1.bf16.msra.mxu0 %v467
    %608 = vmatprep.subr.bf16.mxu0 %v472
    %609 = vmatpush1.bf16.msra.mxu0 %v471
    %610 = vmatprep.mubr.bf16.mxu0 %v214
    %611 = vmatmul.mubr.bf16.gmra.mrb[0].mxu0 %v213
    %v612 = vpop.f32.mrb[0].mxu0
    %v613 = vadd.f32 %v201, %v612
    %v614 = vpop.f32.mrb[0].mxu0
    %v615 = vadd.f32 %v205, %v614
    %v616 = vpop.f32.mrb[0].mxu0
    %v617 = vpop.f32.mrb[0].mxu0
    %618 = vdwg.mxu0
    %v619 = vld [vmem:[#allocation5] sm:$0xf]
    %v620 = vld [vmem:[#allocation10] sm:$0xff]
    %v621 = vld [vmem:[#allocation10 + $0x8] sm:$0xff]
    %v622 = vld [vmem:[#allocation10 + $0x10] sm:$0xff]
    %v623 = vld [vmem:[#allocation10 + $0x18] sm:$0xff]
    %v624 = vld [vmem:[#allocation10 + $0x20] sm:$0xff]
    %v625 = vld [vmem:[#allocation10 + $0x28] sm:$0xff]
    %v626 = vld [vmem:[#allocation10 + $0x30] sm:$0xff]
    %v627 = vld [vmem:[#allocation10 + $0x38] sm:$0xff]
    %v628 = vld [vmem:[#allocation10 + $0x40] sm:$0xff]
    %v629 = vld [vmem:[#allocation10 + $0x48] sm:$0xff]
    %v630 = vld [vmem:[#allocation10 + $0x50] sm:$0xff]
    %v631 = vld [vmem:[#allocation10 + $0x58] sm:$0xff]
    %v632 = vld [vmem:[#allocation10 + $0x60] sm:$0xff]
    %v633 = vld [vmem:[#allocation10 + $0x68] sm:$0xff]
    %v634 = vld [vmem:[#allocation10 + $0x70] sm:$0xff]
    %v635 = vld [vmem:[#allocation10 + $0x78] sm:$0xff]
    %v636 = vld [vmem:[#allocation10 + $0x80] sm:$0xff]
    %v637 = vld [vmem:[#allocation10 + $0x88] sm:$0xff]
    %v638 = vld [vmem:[#allocation10 + $0x90] sm:$0xff]
    %v639 = vld [vmem:[#allocation10 + $0x98] sm:$0xff]
    %v640 = vld [vmem:[#allocation10 + $0xa0] sm:$0xff]
    %v641 = vld [vmem:[#allocation10 + $0xa8] sm:$0xff]
    %v642 = vld [vmem:[#allocation10 + $0xb0] sm:$0xff]
    %v643 = vld [vmem:[#allocation10 + $0xb8] sm:$0xff]
    %v644 = vld [vmem:[#allocation10 + $0xc0] sm:$0xff]
    %v645 = vld [vmem:[#allocation10 + $0xc8] sm:$0xff]
    %v646 = vld [vmem:[#allocation10 + $0xd0] sm:$0xff]
    %v647 = vld [vmem:[#allocation10 + $0xd8] sm:$0xff]
    %v648 = vld [vmem:[#allocation10 + $0xe0] sm:$0xff]
    %v649 = vld [vmem:[#allocation10 + $0xe8] sm:$0xff]
    %v650 = vld [vmem:[#allocation10 + $0xf0] sm:$0xff]
    %v651 = vld [vmem:[#allocation10 + $0xf8] sm:$0xff]
    %v652 = vld [vmem:[%s6] sm:$0xf]
    %v654 = vlaneseq
    %v655 = vshrl.u32 %v654, 7
    %v656 = vsub.s32 0, %v655
    %v657 = vrot.slane %v652, %v656
    %v658 = vlaneseq
    %v659 = vshrl.u32 %v658, 7
    %v660 = vsub.s32 1, %v659
    %v661 = vrot.slane %v652, %v660
    %v662 = vlaneseq
    %v663 = vshrl.u32 %v662, 7
    %v664 = vsub.s32 2, %v663
    %v665 = vrot.slane %v652, %v664
    %v666 = vlaneseq
    %v667 = vshrl.u32 %v666, 7
    %v668 = vsub.s32 3, %v667
    %v669 = vrot.slane %v652, %v668
    %v706 = vunpack.c.l.b16 %v620
    %v707 = vunpack.c.h.b16 %v620
    %v708 = vunpack.c.l.b16 %v621
    %v709 = vunpack.c.h.b16 %v621
    %v710 = vunpack.c.l.b16 %v622
    %v711 = vunpack.c.h.b16 %v622
    %v712 = vunpack.c.l.b16 %v623
    %v713 = vunpack.c.h.b16 %v623
    %v714 = vunpack.c.l.b16 %v624
    %v715 = vunpack.c.h.b16 %v624
    %v716 = vunpack.c.l.b16 %v625
    %v717 = vunpack.c.h.b16 %v625
    %v718 = vunpack.c.l.b16 %v626
    %v719 = vunpack.c.h.b16 %v626
    %v720 = vunpack.c.l.b16 %v627
    %v721 = vunpack.c.h.b16 %v627
    %v722 = vunpack.c.l.b16 %v628
    %v723 = vunpack.c.h.b16 %v628
    %v724 = vunpack.c.l.b16 %v629
    %v725 = vunpack.c.h.b16 %v629
    %v726 = vunpack.c.l.b16 %v630
    %v727 = vunpack.c.h.b16 %v630
    %v728 = vunpack.c.l.b16 %v631
    %v729 = vunpack.c.h.b16 %v631
    %v730 = vunpack.c.l.b16 %v632
    %v731 = vunpack.c.h.b16 %v632
    %v732 = vunpack.c.l.b16 %v633
    %v733 = vunpack.c.h.b16 %v633
    %v734 = vunpack.c.l.b16 %v634
    %v735 = vunpack.c.h.b16 %v634
    %v736 = vunpack.c.l.b16 %v635
    %v737 = vunpack.c.h.b16 %v635
    %v738 = vunpack.c.l.b16 %v636
    %v739 = vunpack.c.h.b16 %v636
    %v740 = vunpack.c.l.b16 %v637
    %v741 = vunpack.c.h.b16 %v637
    %v742 = vunpack.c.l.b16 %v638
    %v743 = vunpack.c.h.b16 %v638
    %v744 = vunpack.c.l.b16 %v639
    %v745 = vunpack.c.h.b16 %v639
    %v746 = vunpack.c.l.b16 %v640
    %v747 = vunpack.c.h.b16 %v640
    %v748 = vunpack.c.l.b16 %v641
    %v749 = vunpack.c.h.b16 %v641
    %v750 = vunpack.c.l.b16 %v642
    %v751 = vunpack.c.h.b16 %v642
    %v752 = vunpack.c.l.b16 %v643
    %v753 = vunpack.c.h.b16 %v643
    %v754 = vunpack.c.l.b16 %v644
    %v755 = vunpack.c.h.b16 %v644
    %v756 = vunpack.c.l.b16 %v645
    %v757 = vunpack.c.h.b16 %v645
    %v758 = vunpack.c.l.b16 %v646
    %v759 = vunpack.c.h.b16 %v646
    %v760 = vunpack.c.l.b16 %v647
    %v761 = vunpack.c.h.b16 %v647
    %v762 = vunpack.c.l.b16 %v648
    %v763 = vunpack.c.h.b16 %v648
    %v764 = vunpack.c.l.b16 %v649
    %v765 = vunpack.c.h.b16 %v649
    %v766 = vunpack.c.l.b16 %v650
    %v767 = vunpack.c.h.b16 %v650
    %v768 = vunpack.c.l.b16 %v651
    %v769 = vunpack.c.h.b16 %v651
    %v770 = vpack.c.b16 %v710, %v706
    %v771 = vpack.c.b16 %v711, %v707
    %v772 = vpack.c.b16 %v712, %v708
    %v773 = vpack.c.b16 %v713, %v709
    %v774 = vpack.c.b16 %v718, %v714
    %v775 = vpack.c.b16 %v719, %v715
    %v776 = vpack.c.b16 %v720, %v716
    %v777 = vpack.c.b16 %v721, %v717
    %v778 = vpack.c.b16 %v726, %v722
    %v779 = vpack.c.b16 %v727, %v723
    %v780 = vpack.c.b16 %v728, %v724
    %v781 = vpack.c.b16 %v729, %v725
    %v782 = vpack.c.b16 %v734, %v730
    %v783 = vpack.c.b16 %v735, %v731
    %v784 = vpack.c.b16 %v736, %v732
    %v785 = vpack.c.b16 %v737, %v733
    %v786 = vpack.c.b16 %v742, %v738
    %v787 = vpack.c.b16 %v743, %v739
    %v788 = vpack.c.b16 %v744, %v740
    %v789 = vpack.c.b16 %v745, %v741
    %v790 = vpack.c.b16 %v750, %v746
    %v791 = vpack.c.b16 %v751, %v747
    %v792 = vpack.c.b16 %v752, %v748
    %v793 = vpack.c.b16 %v753, %v749
    %v794 = vpack.c.b16 %v758, %v754
    %v795 = vpack.c.b16 %v759, %v755
    %v796 = vpack.c.b16 %v760, %v756
    %v797 = vpack.c.b16 %v761, %v757
    %v798 = vpack.c.b16 %v766, %v762
    %v799 = vpack.c.b16 %v767, %v763
    %v800 = vpack.c.b16 %v768, %v764
    %v801 = vpack.c.b16 %v769, %v765
    %834 = vmatprep.subr.bf16.mxu0 %v771
    %835 = vmatpush1.bf16.msra.mxu0 %v770
    %836 = vmatprep.subr.bf16.mxu0 %v775
    %837 = vmatpush1.bf16.msra.mxu0 %v774
    %838 = vmatprep.subr.bf16.mxu0 %v779
    %839 = vmatpush1.bf16.msra.mxu0 %v778
    %840 = vmatprep.subr.bf16.mxu0 %v783
    %841 = vmatpush1.bf16.msra.mxu0 %v782
    %842 = vmatprep.subr.bf16.mxu0 %v787
    %843 = vmatpush1.bf16.msra.mxu0 %v786
    %844 = vmatprep.subr.bf16.mxu0 %v791
    %845 = vmatpush1.bf16.msra.mxu0 %v790
    %846 = vmatprep.subr.bf16.mxu0 %v795
    %847 = vmatpush1.bf16.msra.mxu0 %v794
    %848 = vmatprep.subr.bf16.mxu0 %v799
    %849 = vmatpush1.bf16.msra.mxu0 %v798
    %850 = vmatprep.subr.bf16.mxu0 0
    %851 = vmatpush1.bf16.msra.mxu0 0
    %852 = vmatprep.subr.bf16.mxu0 0
    %853 = vmatpush1.bf16.msra.mxu0 0
    %854 = vmatprep.subr.bf16.mxu0 0
    %855 = vmatpush1.bf16.msra.mxu0 0
    %856 = vmatprep.subr.bf16.mxu0 0
    %857 = vmatpush1.bf16.msra.mxu0 0
    %858 = vmatprep.subr.bf16.mxu0 0
    %859 = vmatpush1.bf16.msra.mxu0 0
    %860 = vmatprep.subr.bf16.mxu0 0
    %861 = vmatpush1.bf16.msra.mxu0 0
    %862 = vmatprep.subr.bf16.mxu0 0
    %863 = vmatpush1.bf16.msra.mxu0 0
    %864 = vmatprep.subr.bf16.mxu0 0
    %865 = vmatpush1.bf16.msra.mxu0 0
    %866 = vmatprep.mubr.bf16.mxu0 0
    %867 = vmatmul.mubr.bf16.gmra.mrb[0].mxu0 %v619
    %v868 = vpop.f32.mrb[0].mxu0
    %v869 = vadd.f32 %v657, %v868
    %v870 = vpop.f32.mrb[0].mxu0
    %v871 = vadd.f32 %v661, %v870
    %v872 = vpop.f32.mrb[0].mxu0
    %v873 = vpop.f32.mrb[0].mxu0
    %874 = vdwg.mxu0
    %875 = vmatprep.subr.bf16.mxu0 %v773
    %876 = vmatpush1.bf16.msra.mxu0 %v772
    %877 = vmatprep.subr.bf16.mxu0 %v777
    %878 = vmatpush1.bf16.msra.mxu0 %v776
    %879 = vmatprep.subr.bf16.mxu0 %v781
    %880 = vmatpush1.bf16.msra.mxu0 %v780
    %881 = vmatprep.subr.bf16.mxu0 %v785
    %882 = vmatpush1.bf16.msra.mxu0 %v784
    %883 = vmatprep.subr.bf16.mxu0 %v789
    %884 = vmatpush1.bf16.msra.mxu0 %v788
    %885 = vmatprep.subr.bf16.mxu0 %v793
    %886 = vmatpush1.bf16.msra.mxu0 %v792
    %887 = vmatprep.subr.bf16.mxu0 %v797
    %888 = vmatpush1.bf16.msra.mxu0 %v796
    %889 = vmatprep.subr.bf16.mxu0 %v801
    %890 = vmatpush1.bf16.msra.mxu0 %v800
    %891 = vmatprep.subr.bf16.mxu0 0
    %892 = vmatpush1.bf16.msra.mxu0 0
    %893 = vmatprep.subr.bf16.mxu0 0
    %894 = vmatpush1.bf16.msra.mxu0 0
    %895 = vmatprep.subr.bf16.mxu0 0
    %896 = vmatpush1.bf16.msra.mxu0 0
    %897 = vmatprep.subr.bf16.mxu0 0
    %898 = vmatpush1.bf16.msra.mxu0 0
    %899 = vmatprep.subr.bf16.mxu0 0
    %900 = vmatpush1.bf16.msra.mxu0 0
    %901 = vmatprep.subr.bf16.mxu0 0
    %902 = vmatpush1.bf16.msra.mxu0 0
    %903 = vmatprep.subr.bf16.mxu0 0
    %904 = vmatpush1.bf16.msra.mxu0 0
    %905 = vmatprep.subr.bf16.mxu0 0
    %906 = vmatpush1.bf16.msra.mxu0 0
    %907 = vmatprep.mubr.bf16.mxu0 0
    %908 = vmatmul.mubr.bf16.gmra.mrb[0].mxu0 %v619
    %v909 = vpop.f32.mrb[0].mxu0
    %v910 = vadd.f32 %v665, %v909
    %v911 = vpop.f32.mrb[0].mxu0
    %v912 = vadd.f32 %v669, %v911
    %v913 = vpop.f32.mrb[0].mxu0
    %v914 = vpop.f32.mrb[0].mxu0
    %915 = vdwg.mxu0
    %v916 = vld [vmem:[%s7] sm:$0xf]
    %v918 = vlaneseq
    %v919 = vshrl.u32 %v918, 7
    %v920 = vsub.s32 0, %v919
    %v921 = vrot.slane %v916, %v920
    %v922 = vlaneseq
    %v923 = vshrl.u32 %v922, 7
    %v924 = vsub.s32 1, %v923
    %v925 = vrot.slane %v916, %v924
    %v926 = vlaneseq
    %v927 = vshrl.u32 %v926, 7
    %v928 = vsub.s32 2, %v927
    %v929 = vrot.slane %v916, %v928
    %v930 = vlaneseq
    %v931 = vshrl.u32 %v930, 7
    %v932 = vsub.s32 3, %v931
    %v933 = vrot.slane %v916, %v932
    %v938 = vmul.f32 %v921, %v869
    %v939 = vmul.f32 %v925, %v871
    %v940 = vmul.f32 %v929, %v910
    %v941 = vmul.f32 %v933, %v912
    %v942 = vld [vmem:[%s8] sm:$0xf]
    %v944 = vlaneseq
    %v945 = vshrl.u32 %v944, 7
    %v946 = vsub.s32 0, %v945
    %v947 = vrot.slane %v942, %v946
    %v948 = vlaneseq
    %v949 = vshrl.u32 %v948, 7
    %v950 = vsub.s32 1, %v949
    %v951 = vrot.slane %v942, %v950
    %v952 = vlaneseq
    %v953 = vshrl.u32 %v952, 7
    %v954 = vsub.s32 2, %v953
    %v955 = vrot.slane %v942, %v954
    %v956 = vlaneseq
    %v957 = vshrl.u32 %v956, 7
    %v958 = vsub.s32 3, %v957
    %v959 = vrot.slane %v942, %v958
    %v964 = vadd.f32 %v938, %v947
    %v965 = vadd.f32 %v939, %v951
    %v966 = vadd.f32 %v940, %v955
    %v967 = vadd.f32 %v941, %v959
    %v968 = vmul.f32 %v572, %v964
    %v969 = vmul.f32 %v574, %v965
    %v970 = vmul.f32 %v613, %v966
    %v971 = vmul.f32 %v615, %v967
    %v972 = vld [vmem:[%s9] sm:$0xf]
    %v974 = vlaneseq
    %v975 = vshrl.u32 %v974, 7
    %v976 = vsub.s32 0, %v975
    %v977 = vrot.slane %v972, %v976
    %v978 = vlaneseq
    %v979 = vshrl.u32 %v978, 7
    %v980 = vsub.s32 1, %v979
    %v981 = vrot.slane %v972, %v980
    %v982 = vlaneseq
    %v983 = vshrl.u32 %v982, 7
    %v984 = vsub.s32 2, %v983
    %v985 = vrot.slane %v972, %v984
    %v986 = vlaneseq
    %v987 = vshrl.u32 %v986, 7
    %v988 = vsub.s32 3, %v987
    %v989 = vrot.slane %v972, %v988
    %v994 = vmul.f32 %v977, %v869
    %v995 = vmul.f32 %v981, %v871
    %v996 = vmul.f32 %v985, %v910
    %v997 = vmul.f32 %v989, %v912
    %v998 = vadd.f32 %v968, %v994
    %v999 = vadd.f32 %v969, %v995
    %v1000 = vadd.f32 %v970, %v996
    %v1001 = vadd.f32 %v971, %v997
    %v1002 = vxor.u32 %v998, 2147483648
    %v1003 = vmul.f32 %v1002, 1.442695
    %v1004 = vpow.pop %v1003
    %v1005 = vadd.f32 %v1004, 1.0
    %v1006 = vrcp.pop %v1005
    %v1007 = vmul.f32 1.0, %v1006
    %v1008 = vxor.u32 %v999, 2147483648
    %v1009 = vmul.f32 %v1008, 1.442695
    %v1010 = vpow.pop %v1009
    %v1011 = vadd.f32 %v1010, 1.0
    %v1012 = vrcp.pop %v1011
    %v1013 = vmul.f32 1.0, %v1012
    %v1014 = vxor.u32 %v1000, 2147483648
    %v1015 = vmul.f32 %v1014, 1.442695
    %v1016 = vpow.pop %v1015
    %v1017 = vadd.f32 %v1016, 1.0
    %v1018 = vrcp.pop %v1017
    %v1019 = vmul.f32 1.0, %v1018
    %v1020 = vtanh.pop %v1001
    %v1021 = vld [vmem:[#allocation7] sm:$0xff]
    %v1022 = vmul.f32 %v1007, %v1021
    %v1023 = vmul.f32 %v1013, %v1020
    %v1024 = vadd.f32 %v1022, %v1023
    %v1025 = vtanh.pop %v1024
    %v1026 = vmul.f32 %v1019, %v1025
    %1027 = vst [vmem:[#allocation14] sm:$0xff] %v1026
    %1028 = vst [vmem:[#allocation16] sm:$0xff] %v1024
    %v1029 = vpack.c.bf16 %v1026, %v1026
    %v1030 = vld [vmem:[#allocation11] sm:$0xf]
    %v1031 = vld [vmem:[#allocation11 + $0x4] sm:$0xf]
    %v1032 = vld [vmem:[#allocation11 + $0x8] sm:$0xf]
    %v1033 = vld [vmem:[#allocation11 + $0xc] sm:$0xf]
    %v1034 = vld [vmem:[#allocation11 + $0x10] sm:$0xf]
    %v1035 = vld [vmem:[#allocation11 + $0x14] sm:$0xf]
    %v1036 = vld [vmem:[#allocation11 + $0x18] sm:$0xf]
    %v1037 = vld [vmem:[#allocation11 + $0x1c] sm:$0xf]
    %v1038 = vld [vmem:[#allocation11 + $0x20] sm:$0xf]
    %v1039 = vld [vmem:[#allocation11 + $0x24] sm:$0xf]
    %v1040 = vld [vmem:[#allocation11 + $0x28] sm:$0xf]
    %v1041 = vld [vmem:[#allocation11 + $0x2c] sm:$0xf]
    %v1042 = vld [vmem:[#allocation11 + $0x30] sm:$0xf]
    %v1043 = vld [vmem:[#allocation11 + $0x34] sm:$0xf]
    %v1044 = vld [vmem:[#allocation11 + $0x38] sm:$0xf]
    %v1045 = vld [vmem:[#allocation11 + $0x3c] sm:$0xf]
    %v1046 = vld [vmem:[%s11] sm:$0x1]
    %v1048 = vlaneseq
    %v1049 = vshrl.u32 %v1048, 7
    %v1050 = vsub.s32 0, %v1049
    %v1051 = vrot.slane %v1046, %v1050
    %v1069 = vunpack.c.l.b16 %v1030
    %v1070 = vunpack.c.l.b16 %v1031
    %v1071 = vunpack.c.l.b16 %v1032
    %v1072 = vunpack.c.l.b16 %v1033
    %v1073 = vunpack.c.l.b16 %v1034
    %v1074 = vunpack.c.l.b16 %v1035
    %v1075 = vunpack.c.l.b16 %v1036
    %v1076 = vunpack.c.l.b16 %v1037
    %v1077 = vunpack.c.l.b16 %v1038
    %v1078 = vunpack.c.l.b16 %v1039
    %v1079 = vunpack.c.l.b16 %v1040
    %v1080 = vunpack.c.l.b16 %v1041
    %v1081 = vunpack.c.l.b16 %v1042
    %v1082 = vunpack.c.l.b16 %v1043
    %v1083 = vunpack.c.l.b16 %v1044
    %v1084 = vunpack.c.l.b16 %v1045
    %v1085 = vpack.c.b16 %v1070, %v1069
    %v1086 = vpack.c.b16 %v1072, %v1071
    %v1087 = vpack.c.b16 %v1074, %v1073
    %v1088 = vpack.c.b16 %v1076, %v1075
    %v1089 = vpack.c.b16 %v1078, %v1077
    %v1090 = vpack.c.b16 %v1080, %v1079
    %v1091 = vpack.c.b16 %v1082, %v1081
    %v1092 = vpack.c.b16 %v1084, %v1083
    %1101 = vmatprep.subr.bf16.mxu0 0
    %1102 = vmatpush1.bf16.msra.mxu0 %v1085
    %1103 = vmatprep.subr.bf16.mxu0 0
    %1104 = vmatpush1.bf16.msra.mxu0 %v1086
    %1105 = vmatprep.subr.bf16.mxu0 0
    %1106 = vmatpush1.bf16.msra.mxu0 %v1087
    %1107 = vmatprep.subr.bf16.mxu0 0
    %1108 = vmatpush1.bf16.msra.mxu0 %v1088
    %1109 = vmatprep.subr.bf16.mxu0 0
    %1110 = vmatpush1.bf16.msra.mxu0 %v1089
    %1111 = vmatprep.subr.bf16.mxu0 0
    %1112 = vmatpush1.bf16.msra.mxu0 %v1090
    %1113 = vmatprep.subr.bf16.mxu0 0
    %1114 = vmatpush1.bf16.msra.mxu0 %v1091
    %1115 = vmatprep.subr.bf16.mxu0 0
    %1116 = vmatpush1.bf16.msra.mxu0 %v1092
    %1117 = vmatprep.subr.bf16.mxu0 0
    %1118 = vmatpush1.bf16.msra.mxu0 0
    %1119 = vmatprep.subr.bf16.mxu0 0
    %1120 = vmatpush1.bf16.msra.mxu0 0
    %1121 = vmatprep.subr.bf16.mxu0 0
    %1122 = vmatpush1.bf16.msra.mxu0 0
    %1123 = vmatprep.subr.bf16.mxu0 0
    %1124 = vmatpush1.bf16.msra.mxu0 0
    %1125 = vmatprep.subr.bf16.mxu0 0
    %1126 = vmatpush1.bf16.msra.mxu0 0
    %1127 = vmatprep.subr.bf16.mxu0 0
    %1128 = vmatpush1.bf16.msra.mxu0 0
    %1129 = vmatprep.subr.bf16.mxu0 0
    %1130 = vmatpush1.bf16.msra.mxu0 0
    %1131 = vmatprep.subr.bf16.mxu0 0
    %1132 = vmatpush1.bf16.msra.mxu0 0
    %1133 = vmatprep.mubr.bf16.mxu0 0
    %1134 = vmatmul.mubr.bf16.gmra.mrb[0].mxu0 %v1029
    %v1135 = vpop.f32.mrb[0].mxu0
    %v1136 = vadd.f32 %v1051, %v1135
    %v1137 = vpop.f32.mrb[0].mxu0
    %v1138 = vpop.f32.mrb[0].mxu0
    %v1139 = vpop.f32.mrb[0].mxu0
    %1140 = vdwg.mxu0
    %1141 = vst [vmem:[#allocation13] sm:$0xff] %v1136
    // Predicated region
    $region74: #{tpu_custom_call.1} parent=1 // pred_check
      _
    $region75: #{tpu_custom_call.1} parent=1 // pred_check_branch
      %1143 = sbr.rel (0) target = $region77
    $region76: #{tpu_custom_call.1} parent=1 // pred_region
      %s1145 = ssub.s32 128, 128
      %1146 = vsyncadd [#allocation4], %s1145
      %s1148 = sshll.u32 [#allocation13], 4
      %s1149 = int_to_ptr.vmem [resolvable:$true] %s1148
      %1151 = dma.vmem_to_hbm [thread:$0]  %s1149, 128, %s12, [#allocation4]
    $region77: #{tpu_custom_call.1} parent=1 // pred_fallthru
      _
    // Predicated region
    $region78: #{tpu_custom_call.1} parent=1 // pred_check
      _
    $region79: #{tpu_custom_call.1} parent=1 // pred_check_branch
      %1153 = sbr.rel (0) target = $region81
    $region80: #{tpu_custom_call.1} parent=1 // pred_region
      %s1155 = ssub.s32 128, 128
      %1156 = vsyncadd [#allocation15], %s1155
      %s1158 = sshll.u32 [#allocation14], 4
      %s1159 = int_to_ptr.vmem [resolvable:$true] %s1158
      %1161 = dma.vmem_to_hbm [thread:$0]  %s1159, 128, %s13, [#allocation15]
    $region81: #{tpu_custom_call.1} parent=1 // pred_fallthru
      _
    // Predicated region
    $region82: #{tpu_custom_call.1} parent=1 // pred_check
      _
    $region83: #{tpu_custom_call.1} parent=1 // pred_check_branch
      %1163 = sbr.rel (0) target = $region85
    $region84: #{tpu_custom_call.1} parent=1 // pred_region
      %s1165 = ssub.s32 128, 128
      %1166 = vsyncadd [#allocation15], %s1165
      %s1168 = sshll.u32 [#allocation16], 4
      %s1169 = int_to_ptr.vmem [resolvable:$true] %s1168
      %1171 = dma.vmem_to_hbm [thread:$0]  %s1169, 128, %s14, [#allocation15]
    $region85: #{tpu_custom_call.1} parent=1 // pred_fallthru
      _
    // Predicated region
    $region86: #{tpu_custom_call.1} parent=1 // pred_check
      _
    $region87: #{tpu_custom_call.1} parent=1 // pred_check_branch
      %1173 = sbr.rel (0) target = $region89
    $region88: #{tpu_custom_call.1} parent=1 // pred_region
      %1174 = dma.done [#allocation4], 128
    $region89: #{tpu_custom_call.1} parent=1 // pred_fallthru
      _
    // Predicated region
    $region90: #{tpu_custom_call.1} parent=1 // pred_check
      _
    $region91: #{tpu_custom_call.1} parent=1 // pred_check_branch
      %1176 = sbr.rel (0) target = $region93
    $region92: #{tpu_custom_call.1} parent=1 // pred_region
      %1177 = dma.done [#allocation15], 128
    $region93: #{tpu_custom_call.1} parent=1 // pred_fallthru
      _
    // Predicated region
    $region94: #{tpu_custom_call.1} parent=1 // pred_check
      _
    $region95: #{tpu_custom_call.1} parent=1 // pred_check_branch
      %1179 = sbr.rel (0) target = $region97
    $region96: #{tpu_custom_call.1} parent=1 // pred_region
      %1180 = dma.done [#allocation15], 128
    $region97: #{tpu_custom_call.1} parent=1 // pred_fallthru
      _
    %1181 = vsyncpa [#allocation3], 1
    %1182 = vsyncpa [#allocation6], 1
    %1183 = vsyncpa [#allocation9], 1
    %1184 = vsyncpa [#allocation12], 1
    %1185 = vsyncpa [#allocation4], 1
    %1186 = vsyncpa [#allocation15], 1

</llo_original>
